<compile_context>
chip_gen: v6e
topology: v6e:2x2x1
jax: 0.10.0
libtpu: 0.0.40
codegen_flags: <defaults>
</compile_context>

<pallas_src>
import jax
import jax.numpy as jnp
from jax.experimental import pallas as pl
from jax.experimental.pallas import tpu as pltpu


def baseline_kernel(x_ref, w0_ref, b0_ref, w1_ref, b1_ref, w2_ref, b2_ref,
                    w3_ref, b3_ref, out_ref):
    """One batch tile of the full forward pass.

    x_ref : (TILE_B, n_dim)        lane-dense flattened input
    w0_ref: (n_dim, n_dim)         block-diagonal fused layer0 weight
    b0_ref: (1, n_dim)             concatenated layer0 biases
    w1_ref: (n_dim, n_dim)         b1_ref: (1, n_dim)
    w2_ref: (n_dim, n_dim)         b2_ref: (1, n_dim)
    w3_ref: (n_dim, n_targets)     b3_ref: (1, n_targets)
    out_ref: (TILE_B, n_targets)
    """
    x = x_ref[...]
    # fused layer0: equivalent to the max_size per-slice Linears + concat
    h = jnp.dot(x, w0_ref[...], preferred_element_type=jnp.float32) + b0_ref[...]
    # l1 / l2 with tanh, l3 linear
    h = jnp.tanh(jnp.dot(h, w1_ref[...],
                         preferred_element_type=jnp.float32) + b1_ref[...])
    h = jnp.tanh(jnp.dot(h, w2_ref[...],
                         preferred_element_type=jnp.float32) + b2_ref[...])
    out_ref[...] = jnp.dot(h, w3_ref[...],
                           preferred_element_type=jnp.float32) + b3_ref[...]


def _round_up(x, m):
    return (x + m - 1) // m * m


def _block_diag_from_slices(w0):
    """w0: (max_size, d, d) with (in, out) convention -> (max_size*d, max_size*d)."""
    max_size, d, _ = w0.shape
    eye = jnp.eye(max_size, dtype=w0.dtype)
    # W_blk[i*d + a, j*d + b] = w0[i, a, b] * (i == j)
    return jnp.einsum('iab,ij->iajb', w0, eye).reshape(max_size * d, max_size * d)


def baseline_forward(x, params, *, max_size, d_model, n_targets, tile_b=256):
    """x: anything reshapable to (-1, 50, 16), exactly like the torch forward."""
    (w0, b0, w1, b1, w2, b2, w3, b3) = params

    # glue: the hard-coded reshape from the PyTorch forward, then contiguous
    # row-major flatten of the first max_size slices -> lane-dense (B, n_dim).
    x_r = jnp.reshape(x, (-1, 50, 16))[:, :max_size, :]
    B = x_r.shape[0]
    n_dim = max_size * d_model
    x_flat = jnp.reshape(x_r, (B, n_dim))

    # fused layer0 parameters (exact equivalent of per-slice Linears + concat)
    w0_blk = _block_diag_from_slices(w0)          # (n_dim, n_dim)
    b0_cat = jnp.reshape(b0, (1, n_dim))          # (1, n_dim)

    # batch tiling: multiple of 8 sublanes, cap at 256 rows per tile
    tile_b_eff = min(tile_b, _round_up(B, 8))
    B_pad = _round_up(B, tile_b_eff)
    if B_pad != B:
        x_flat = jnp.pad(x_flat, ((0, B_pad - B), (0, 0)))

    grid = (B_pad // tile_b_eff,)

    cost = pl.CostEstimate(
        flops=2 * B_pad * (3 * n_dim * n_dim + n_dim * n_targets),
        transcendentals=2 * B_pad * n_dim,
        bytes_accessed=4 * (B_pad * n_dim                 # x
                            + 3 * n_dim * n_dim           # w0_blk, w1, w2
                            + n_dim * n_targets           # w3
                            + 3 * n_dim + n_targets       # biases
                            + B_pad * n_targets),         # out
    )

    out = pl.pallas_call(
        baseline_kernel,
        out_shape=jax.ShapeDtypeStruct((B_pad, n_targets), jnp.float32),
        grid=grid,
        in_specs=[
            pl.BlockSpec((tile_b_eff, n_dim), lambda i: (i, 0)),   # x tile
            pl.BlockSpec((n_dim, n_dim), lambda i: (0, 0)),        # w0_blk (resident)
            pl.BlockSpec((1, n_dim), lambda i: (0, 0)),            # b0_cat
            pl.BlockSpec((n_dim, n_dim), lambda i: (0, 0)),        # w1
            pl.BlockSpec((1, n_dim), lambda i: (0, 0)),            # b1
            pl.BlockSpec((n_dim, n_dim), lambda i: (0, 0)),        # w2
            pl.BlockSpec((1, n_dim), lambda i: (0, 0)),            # b2
            pl.BlockSpec((n_dim, n_targets), lambda i: (0, 0)),    # w3
            pl.BlockSpec((1, n_targets), lambda i: (0, 0)),        # b3
        ],
        out_specs=pl.BlockSpec((tile_b_eff, n_targets), lambda i: (i, 0)),
        compiler_params=pltpu.CompilerParams(
            dimension_semantics=("parallel",)),
        cost_estimate=cost,
    )(x_flat, w0_blk, b0_cat, w1, b1, w2, b2, w3, b3)

    return out[:B]


def init_params(key, *, max_size, d_model, n_dim, n_targets):
    ks = jax.random.split(key, 8)
    scale = 0.1
    # layer0 weights stored as (in, out) for each slice
    w0 = scale * jax.random.normal(ks[0], (max_size, d_model, d_model), jnp.float32)
    b0 = scale * jax.random.normal(ks[1], (max_size, d_model), jnp.float32)
    w1 = scale * jax.random.normal(ks[2], (n_dim, n_dim), jnp.float32)
    b1 = scale * jax.random.normal(ks[3], (1, n_dim), jnp.float32)
    w2 = scale * jax.random.normal(ks[4], (n_dim, n_dim), jnp.float32)
    b2 = scale * jax.random.normal(ks[5], (1, n_dim), jnp.float32)
    w3 = scale * jax.random.normal(ks[6], (n_dim, n_targets), jnp.float32)
    b3 = scale * jax.random.normal(ks[7], (1, n_targets), jnp.float32)
    return (w0, b0, w1, b1, w2, b2, w3, b3)


def reference_forward(x, params, *, max_size, d_model, n_targets):
    """Pure-JAX reference replicating the PyTorch forward (per-slice form)."""
    (w0, b0, w1, b1, w2, b2, w3, b3) = params
    x_r = jnp.reshape(x, (-1, 50, 16))
    outs = [x_r[:, i, :] @ w0[i] + b0[i] for i in range(max_size)]
    h = jnp.concatenate(outs, axis=1)
    h = jnp.tanh(h @ w1 + b1)
    h = jnp.tanh(h @ w2 + b2)
    return h @ w3 + b3


if __name__ == "__main__":
    # Module hyperparameters consistent with the hard-coded reshape(-1, 50, 16):
    #   d_model = 16, max_size <= 50, n_dimension = max_size * d_model
    d_model = 16
    max_size = 8
    n_dimension = max_size * d_model   # 128
    n_targets = 8
    batch = 2

    key = jax.random.PRNGKey(0)
    k_x, k_p = jax.random.split(key)
    # input must be reshapable to (-1, 50, 16): give each batch element 800 elems
    x = jax.random.normal(k_x, (batch, 50 * 16), jnp.float32)
    params = init_params(k_p, max_size=max_size, d_model=d_model,
                         n_dim=n_dimension, n_targets=n_targets)

    out = baseline_forward(x, params, max_size=max_size, d_model=d_model,
                           n_targets=n_targets)
    out = jax.block_until_ready(out)

    ref = reference_forward(x, params, max_size=max_size, d_model=d_model,
                            n_targets=n_targets)
    assert out.shape == (batch, n_targets)
    assert jnp.allclose(out, ref, atol=1e-4, rtol=1e-4)

    print("KERNEL_OK")
</pallas_src>

<mosaic_0001>
module attributes {stable_mosaic.version = 11 : i64} {
  func.func @baseline_kernel(%arg0: i32, %arg1: memref<8x128xf32, #tpu.memory_space<vmem>>, %arg2: memref<128x128xf32, #tpu.memory_space<vmem>>, %arg3: memref<1x128xf32, #tpu.memory_space<vmem>>, %arg4: memref<128x128xf32, #tpu.memory_space<vmem>>, %arg5: memref<1x128xf32, #tpu.memory_space<vmem>>, %arg6: memref<128x128xf32, #tpu.memory_space<vmem>>, %arg7: memref<1x128xf32, #tpu.memory_space<vmem>>, %arg8: memref<128x8xf32, #tpu.memory_space<vmem>>, %arg9: memref<1x8xf32, #tpu.memory_space<vmem>>, %arg10: memref<8x8xf32, #tpu.memory_space<vmem>>) attributes {dimension_semantics = [#tpu.dimension_semantics<parallel>], iteration_bounds = array<i64: 1>, scalar_prefetch = 0 : i64, scratch_operands = 0 : i64, tpu.core_type = #tpu.core_type<tc>, window_params = [{transform_indices = @transform_0, window_bounds = array<i64: 8, 128>}, {pipeline_mode = #tpu.pipeline_mode<synchronous>, transform_indices = @transform_1, window_bounds = array<i64: 128, 128>}, {pipeline_mode = #tpu.pipeline_mode<synchronous>, transform_indices = @transform_2, window_bounds = array<i64: 1, 128>}, {pipeline_mode = #tpu.pipeline_mode<synchronous>, transform_indices = @transform_3, window_bounds = array<i64: 128, 128>}, {pipeline_mode = #tpu.pipeline_mode<synchronous>, transform_indices = @transform_4, window_bounds = array<i64: 1, 128>}, {pipeline_mode = #tpu.pipeline_mode<synchronous>, transform_indices = @transform_5, window_bounds = array<i64: 128, 128>}, {pipeline_mode = #tpu.pipeline_mode<synchronous>, transform_indices = @transform_6, window_bounds = array<i64: 1, 128>}, {pipeline_mode = #tpu.pipeline_mode<synchronous>, transform_indices = @transform_7, window_bounds = array<i64: 128, 8>}, {pipeline_mode = #tpu.pipeline_mode<synchronous>, transform_indices = @transform_8, window_bounds = array<i64: 1, 8>}, {transform_indices = @transform_9, window_bounds = array<i64: 8, 8>}]} {
    %c0 = arith.constant 0 : index
    %c0_0 = arith.constant 0 : index
    %0 = vector.load %arg1[%c0, %c0_0] : memref<8x128xf32, #tpu.memory_space<vmem>>, vector<8x128xf32>
    %c0_1 = arith.constant 0 : index
    %c0_2 = arith.constant 0 : index
    %1 = vector.load %arg2[%c0_1, %c0_2] : memref<128x128xf32, #tpu.memory_space<vmem>>, vector<128x128xf32>
    %cst = arith.constant dense<0.000000e+00> : vector<8x128xf32>
    %2 = tpu.matmul %0, %1, %cst {dimension_numbers = #tpu.dot_dimension_numbers<[1], [0], [0], [1], [0, 0, 1, 1], [], []>} : vector<8x128xf32>, vector<128x128xf32>, vector<8x128xf32> -> vector<8x128xf32>
    %c0_3 = arith.constant 0 : index
    %c0_4 = arith.constant 0 : index
    %3 = vector.load %arg3[%c0_3, %c0_4] : memref<1x128xf32, #tpu.memory_space<vmem>>, vector<1x128xf32>
    %4 = vector.broadcast %3 : vector<1x128xf32> to vector<8x128xf32>
    %5 = arith.addf %2, %4 : vector<8x128xf32>
    %c0_5 = arith.constant 0 : index
    %c0_6 = arith.constant 0 : index
    %6 = vector.load %arg4[%c0_5, %c0_6] : memref<128x128xf32, #tpu.memory_space<vmem>>, vector<128x128xf32>
    %cst_7 = arith.constant dense<0.000000e+00> : vector<8x128xf32>
    %7 = tpu.matmul %5, %6, %cst_7 {dimension_numbers = #tpu.dot_dimension_numbers<[1], [0], [0], [1], [0, 0, 1, 1], [], []>} : vector<8x128xf32>, vector<128x128xf32>, vector<8x128xf32> -> vector<8x128xf32>
    %c0_8 = arith.constant 0 : index
    %c0_9 = arith.constant 0 : index
    %8 = vector.load %arg5[%c0_8, %c0_9] : memref<1x128xf32, #tpu.memory_space<vmem>>, vector<1x128xf32>
    %9 = vector.broadcast %8 : vector<1x128xf32> to vector<8x128xf32>
    %10 = arith.addf %7, %9 : vector<8x128xf32>
    %11 = math.tanh %10 : vector<8x128xf32>
    %c0_10 = arith.constant 0 : index
    %c0_11 = arith.constant 0 : index
    %12 = vector.load %arg6[%c0_10, %c0_11] : memref<128x128xf32, #tpu.memory_space<vmem>>, vector<128x128xf32>
    %cst_12 = arith.constant dense<0.000000e+00> : vector<8x128xf32>
    %13 = tpu.matmul %11, %12, %cst_12 {dimension_numbers = #tpu.dot_dimension_numbers<[1], [0], [0], [1], [0, 0, 1, 1], [], []>} : vector<8x128xf32>, vector<128x128xf32>, vector<8x128xf32> -> vector<8x128xf32>
    %c0_13 = arith.constant 0 : index
    %c0_14 = arith.constant 0 : index
    %14 = vector.load %arg7[%c0_13, %c0_14] : memref<1x128xf32, #tpu.memory_space<vmem>>, vector<1x128xf32>
    %15 = vector.broadcast %14 : vector<1x128xf32> to vector<8x128xf32>
    %16 = arith.addf %13, %15 : vector<8x128xf32>
    %17 = math.tanh %16 : vector<8x128xf32>
    %c0_15 = arith.constant 0 : index
    %c0_16 = arith.constant 0 : index
    %18 = vector.load %arg8[%c0_15, %c0_16] : memref<128x8xf32, #tpu.memory_space<vmem>>, vector<128x8xf32>
    %cst_17 = arith.constant dense<0.000000e+00> : vector<8x8xf32>
    %19 = tpu.matmul %17, %18, %cst_17 {dimension_numbers = #tpu.dot_dimension_numbers<[1], [0], [0], [1], [0, 0, 1, 1], [], []>} : vector<8x128xf32>, vector<128x8xf32>, vector<8x8xf32> -> vector<8x8xf32>
    %c0_18 = arith.constant 0 : index
    %c0_19 = arith.constant 0 : index
    %20 = vector.load %arg9[%c0_18, %c0_19] : memref<1x8xf32, #tpu.memory_space<vmem>>, vector<1x8xf32>
    %21 = vector.broadcast %20 : vector<1x8xf32> to vector<8x8xf32>
    %22 = arith.addf %19, %21 : vector<8x8xf32>
    %c0_20 = arith.constant 0 : index
    %c0_21 = arith.constant 0 : index
    %23 = vector.load %arg10[%c0_20, %c0_21] : memref<8x8xf32, #tpu.memory_space<vmem>>, vector<8x8xf32>
    tpu.vector_store %arg10[%c0_20, %c0_21], %22 {strides = array<i32>} : memref<8x8xf32, #tpu.memory_space<vmem>>, vector<8x8xf32>,
    return
  }
  func.func @transform_0(%arg0: i32) -> (i32, i32) {
    %c0_i32 = arith.constant 0 : i32
    %c0_i32_0 = arith.constant 0 : i32
    return %arg0, %c0_i32 : i32, i32
  }
  func.func @transform_1(%arg0: i32) -> (i32, i32) {
    %c0_i32 = arith.constant 0 : i32
    %c0_i32_0 = arith.constant 0 : i32
    %c0_i32_1 = arith.constant 0 : i32
    return %c0_i32, %c0_i32_0 : i32, i32
  }
  func.func @transform_2(%arg0: i32) -> (i32, i32) {
    %c0_i32 = arith.constant 0 : i32
    %c0_i32_0 = arith.constant 0 : i32
    %c0_i32_1 = arith.constant 0 : i32
    return %c0_i32, %c0_i32_0 : i32, i32
  }
  func.func @transform_3(%arg0: i32) -> (i32, i32) {
    %c0_i32 = arith.constant 0 : i32
    %c0_i32_0 = arith.constant 0 : i32
    %c0_i32_1 = arith.constant 0 : i32
    return %c0_i32, %c0_i32_0 : i32, i32
  }
  func.func @transform_4(%arg0: i32) -> (i32, i32) {
    %c0_i32 = arith.constant 0 : i32
    %c0_i32_0 = arith.constant 0 : i32
    %c0_i32_1 = arith.constant 0 : i32
    return %c0_i32, %c0_i32_0 : i32, i32
  }
  func.func @transform_5(%arg0: i32) -> (i32, i32) {
    %c0_i32 = arith.constant 0 : i32
    %c0_i32_0 = arith.constant 0 : i32
    %c0_i32_1 = arith.constant 0 : i32
    return %c0_i32, %c0_i32_0 : i32, i32
  }
  func.func @transform_6(%arg0: i32) -> (i32, i32) {
    %c0_i32 = arith.constant 0 : i32
    %c0_i32_0 = arith.constant 0 : i32
    %c0_i32_1 = arith.constant 0 : i32
    return %c0_i32, %c0_i32_0 : i32, i32
  }
  func.func @transform_7(%arg0: i32) -> (i32, i32) {
    %c0_i32 = arith.constant 0 : i32
    %c0_i32_0 = arith.constant 0 : i32
    %c0_i32_1 = arith.constant 0 : i32
    return %c0_i32, %c0_i32_0 : i32, i32
  }
  func.func @transform_8(%arg0: i32) -> (i32, i32) {
    %c0_i32 = arith.constant 0 : i32
    %c0_i32_0 = arith.constant 0 : i32
    %c0_i32_1 = arith.constant 0 : i32
    return %c0_i32, %c0_i32_0 : i32, i32
  }
  func.func @transform_9(%arg0: i32) -> (i32, i32) {
    %c0_i32 = arith.constant 0 : i32
    %c0_i32_0 = arith.constant 0 : i32
    return %arg0, %c0_i32 : i32, i32
  }
}

</mosaic_0001>

<llo_original>
// kernel: tpu_custom_call.1
$region0: #{tpu_custom_call.1}
  #allocation0 [shape = 'u32[]', space=smem, size = 0x4, offset = 0x4, fixed_abs, tag = 'smem constant byte address 0x4 - core index']
  #allocation1 [shape = 'u32[144,128]{1,0:T(1,128)}', space=vmem, size = 0x12000, scoped, tag = 'internal scratch']
  %s0 = inlined_call_operand.vmem [shape: f32[8,128], index: 0, kind: input, shape index: {}]
  %s1 = inlined_call_operand.vmem [shape: f32[128,128], index: 1, kind: input, shape index: {}]
  %s2 = inlined_call_operand.vmem [shape: f32[1,128], index: 2, kind: input, shape index: {}]
  %s3 = inlined_call_operand.hbm [shape: f32[128,128], index: 3, kind: input, shape index: {}]
  %s4 = inlined_call_operand.vmem [shape: f32[1,128], index: 4, kind: input, shape index: {}]
  %s5 = inlined_call_operand.hbm [shape: f32[128,128], index: 5, kind: input, shape index: {}]
  %s6 = inlined_call_operand.vmem [shape: f32[1,128], index: 6, kind: input, shape index: {}]
  %s7 = inlined_call_operand.vmem [shape: f32[128,8], index: 7, kind: input, shape index: {}]
  %s8 = inlined_call_operand.vmem [shape: f32[1,8], index: 8, kind: input, shape index: {}]
  %s9 = inlined_call_operand.hbm [shape: f32[8,8], index: 9, kind: output, shape index: {}]
  %s10 = sld [smem:[#allocation0]]
  $region54: #{tpu_custom_call.1} parent=0
    _
  %s12 = ssub.s32 1, %s10
  %s13 = scalar_select 0, %s12, %s10
  $region1: #{tpu_custom_call.1} parent=0
    #allocation2 [shape = 'u8[65536]{0}', space=vmem, size = 0x10000, scoped, tag = 'input window, operand 3, single buffered']
    #allocation3 [shape = 's32[1]{0}', space=sflag, size = 0x4, scoped, tag = 'scoped memory for tpu_custom_call.1']
    #allocation4 [shape = 's32[1]{0}', space=sflag, size = 0x4, scoped, tag = 'scoped memory for tpu_custom_call.1']
    #allocation5 [shape = 'u8[65536]{0}', space=vmem, size = 0x10000, scoped, tag = 'input window, operand 5, single buffered']
    #allocation6 [shape = 's32[1]{0}', space=sflag, size = 0x4, scoped, tag = 'scoped memory for tpu_custom_call.1']
    #allocation7 [shape = 'u8[4096]{0}', space=vmem, size = 0x1000, scoped, tag = 'output window, operand 0, single buffered']
    %14 = vsyncpa [#allocation3], 0
    %15 = vsyncpa [#allocation6], 0
    %16 = vsyncpa [#allocation4], 0
    // Predicated region
    $region2: #{tpu_custom_call.1} parent=1 // pred_check
      _
    $region3: #{tpu_custom_call.1} parent=1 // pred_check_branch
      %18 = sbr.rel (0) target = $region5
    $region4: #{tpu_custom_call.1} parent=1 // pred_region
      _
    $region5: #{tpu_custom_call.1} parent=1 // pred_fallthru
      _
    // Predicated region
    $region6: #{tpu_custom_call.1} parent=1 // pred_check
      _
    $region7: #{tpu_custom_call.1} parent=1 // pred_check_branch
      %20 = sbr.rel (0) target = $region9
    $region8: #{tpu_custom_call.1} parent=1 // pred_region
      _
    $region9: #{tpu_custom_call.1} parent=1 // pred_fallthru
      _
    // Predicated region
    $region10: #{tpu_custom_call.1} parent=1 // pred_check
      _
    $region11: #{tpu_custom_call.1} parent=1 // pred_check_branch
      %22 = sbr.rel (0) target = $region13
    $region12: #{tpu_custom_call.1} parent=1 // pred_region
      _
    $region13: #{tpu_custom_call.1} parent=1 // pred_fallthru
      _
    // Predicated region
    $region14: #{tpu_custom_call.1} parent=1 // pred_check
      _
    $region15: #{tpu_custom_call.1} parent=1 // pred_check_branch
      %24 = sbr.rel (0) target = $region17
    $region16: #{tpu_custom_call.1} parent=1 // pred_region
      %s26 = ssub.s32 2048, 2048
      %27 = vsyncadd [#allocation3], %s26
      %s28 = sshll.u32 [#allocation2], 4
      %s29 = int_to_ptr.vmem [resolvable:$true] %s28
      %34 = dma.hbm_to_vmem [thread:$0]  %s3, 2048, %s29, [#allocation3], 128, 128, 8
    $region17: #{tpu_custom_call.1} parent=1 // pred_fallthru
      _
    // Predicated region
    $region18: #{tpu_custom_call.1} parent=1 // pred_check
      _
    $region19: #{tpu_custom_call.1} parent=1 // pred_check_branch
      %36 = sbr.rel (0) target = $region21
    $region20: #{tpu_custom_call.1} parent=1 // pred_region
      _
    $region21: #{tpu_custom_call.1} parent=1 // pred_fallthru
      _
    // Predicated region
    $region22: #{tpu_custom_call.1} parent=1 // pred_check
      _
    $region23: #{tpu_custom_call.1} parent=1 // pred_check_branch
      %38 = sbr.rel (0) target = $region25
    $region24: #{tpu_custom_call.1} parent=1 // pred_region
      %s40 = ssub.s32 2048, 2048
      %41 = vsyncadd [#allocation6], %s40
      %s42 = sshll.u32 [#allocation5], 4
      %s43 = int_to_ptr.vmem [resolvable:$true] %s42
      %48 = dma.hbm_to_vmem [thread:$0]  %s5, 2048, %s43, [#allocation6], 128, 128, 8
    $region25: #{tpu_custom_call.1} parent=1 // pred_fallthru
      _
    // Predicated region
    $region26: #{tpu_custom_call.1} parent=1 // pred_check
      _
    $region27: #{tpu_custom_call.1} parent=1 // pred_check_branch
      %50 = sbr.rel (0) target = $region29
    $region28: #{tpu_custom_call.1} parent=1 // pred_region
      _
    $region29: #{tpu_custom_call.1} parent=1 // pred_fallthru
      _
    // Predicated region
    $region30: #{tpu_custom_call.1} parent=1 // pred_check
      _
    $region31: #{tpu_custom_call.1} parent=1 // pred_check_branch
      %52 = sbr.rel (0) target = $region33
    $region32: #{tpu_custom_call.1} parent=1 // pred_region
      _
    $region33: #{tpu_custom_call.1} parent=1 // pred_fallthru
      _
    // Predicated region
    $region34: #{tpu_custom_call.1} parent=1 // pred_check
      _
    $region35: #{tpu_custom_call.1} parent=1 // pred_check_branch
      %54 = sbr.rel (0) target = $region37
    $region36: #{tpu_custom_call.1} parent=1 // pred_region
      _
    $region37: #{tpu_custom_call.1} parent=1 // pred_fallthru
      _
    // Predicated region
    $region38: #{tpu_custom_call.1} parent=1 // pred_check
      _
    $region39: #{tpu_custom_call.1} parent=1 // pred_check_branch
      %56 = sbr.rel (0) target = $region41
    $region40: #{tpu_custom_call.1} parent=1 // pred_region
      %57 = dma.done [#allocation3], 2048
    $region41: #{tpu_custom_call.1} parent=1 // pred_fallthru
      _
    // Predicated region
    $region42: #{tpu_custom_call.1} parent=1 // pred_check
      _
    $region43: #{tpu_custom_call.1} parent=1 // pred_check_branch
      %59 = sbr.rel (0) target = $region45
    $region44: #{tpu_custom_call.1} parent=1 // pred_region
      %60 = dma.done [#allocation6], 2048
    $region45: #{tpu_custom_call.1} parent=1 // pred_fallthru
      _
    %v61 = vld [vmem:[%s0] sm:$0xff]
    %v62 = vld [vmem:[%s1] sm:$0xff]
    %v63 = vld [vmem:[%s1 + $0x8] sm:$0xff]
    %v64 = vld [vmem:[%s1 + $0x10] sm:$0xff]
    %v65 = vld [vmem:[%s1 + $0x18] sm:$0xff]
    %v66 = vld [vmem:[%s1 + $0x20] sm:$0xff]
    %v67 = vld [vmem:[%s1 + $0x28] sm:$0xff]
    %v68 = vld [vmem:[%s1 + $0x30] sm:$0xff]
    %v69 = vld [vmem:[%s1 + $0x38] sm:$0xff]
    %v70 = vld [vmem:[%s1 + $0x40] sm:$0xff]
    %v71 = vld [vmem:[%s1 + $0x48] sm:$0xff]
    %v72 = vld [vmem:[%s1 + $0x50] sm:$0xff]
    %v73 = vld [vmem:[%s1 + $0x58] sm:$0xff]
    %v74 = vld [vmem:[%s1 + $0x60] sm:$0xff]
    %v75 = vld [vmem:[%s1 + $0x68] sm:$0xff]
    %v76 = vld [vmem:[%s1 + $0x70] sm:$0xff]
    %v77 = vld [vmem:[%s1 + $0x78] sm:$0xff]
    %v78 = vld [vmem:[%s2] sm:$0x1]
    %v80 = vlaneseq
    %v81 = vshrl.u32 %v80, 7
    %v82 = vsub.s32 0, %v81
    %v83 = vrot.slane %v78, %v82
    %85 = vmatprep.subr.mxu0 0.0
    %86 = vmatpush1.msra.mxu0 %v77
    %87 = vmatprep.subr.mxu0 0.0
    %88 = vmatpush1.msra.mxu0 %v76
    %89 = vmatprep.subr.mxu0 0.0
    %90 = vmatpush1.msra.mxu0 %v75
    %91 = vmatprep.subr.mxu0 0.0
    %92 = vmatpush1.msra.mxu0 %v74
    %93 = vmatprep.subr.mxu0 0.0
    %94 = vmatpush1.msra.mxu0 %v73
    %95 = vmatprep.subr.mxu0 0.0
    %96 = vmatpush1.msra.mxu0 %v72
    %97 = vmatprep.subr.mxu0 0.0
    %98 = vmatpush1.msra.mxu0 %v71
    %99 = vmatprep.subr.mxu0 0.0
    %100 = vmatpush1.msra.mxu0 %v70
    %101 = vmatprep.subr.mxu0 0.0
    %102 = vmatpush1.msra.mxu0 %v69
    %103 = vmatprep.subr.mxu0 0.0
    %104 = vmatpush1.msra.mxu0 %v68
    %105 = vmatprep.subr.mxu0 0.0
    %106 = vmatpush1.msra.mxu0 %v67
    %107 = vmatprep.subr.mxu0 0.0
    %108 = vmatpush1.msra.mxu0 %v66
    %109 = vmatprep.subr.mxu0 0.0
    %110 = vmatpush1.msra.mxu0 %v65
    %111 = vmatprep.subr.mxu0 0.0
    %112 = vmatpush1.msra.mxu0 %v64
    %113 = vmatprep.subr.mxu0 0.0
    %114 = vmatpush1.msra.mxu0 %v63
    %115 = vmatprep.subr.mxu0 0.0
    %116 = vmatpush1.msra.mxu0 %v62
    %117 = vmatprep.subr.mxu0 0.0
    %118 = vmatpush2.msra.mxu0 0.0
    %119 = vmatprep.subr.mxu0 0.0
    %120 = vmatpush2.msra.mxu0 0.0
    %121 = vmatprep.subr.mxu0 0.0
    %122 = vmatpush2.msra.mxu0 0.0
    %123 = vmatprep.subr.mxu0 0.0
    %124 = vmatpush2.msra.mxu0 0.0
    %125 = vmatprep.subr.mxu0 0.0
    %126 = vmatpush2.msra.mxu0 0.0
    %127 = vmatprep.subr.mxu0 0.0
    %128 = vmatpush2.msra.mxu0 0.0
    %129 = vmatprep.subr.mxu0 0.0
    %130 = vmatpush2.msra.mxu0 0.0
    %131 = vmatprep.subr.mxu0 0.0
    %132 = vmatpush2.msra.mxu0 0.0
    %133 = vmatprep.subr.mxu0 0.0
    %134 = vmatpush2.msra.mxu0 0.0
    %135 = vmatprep.subr.mxu0 0.0
    %136 = vmatpush2.msra.mxu0 0.0
    %137 = vmatprep.subr.mxu0 0.0
    %138 = vmatpush2.msra.mxu0 0.0
    %139 = vmatprep.subr.mxu0 0.0
    %140 = vmatpush2.msra.mxu0 0.0
    %141 = vmatprep.subr.mxu0 0.0
    %142 = vmatpush2.msra.mxu0 0.0
    %143 = vmatprep.subr.mxu0 0.0
    %144 = vmatpush2.msra.mxu0 0.0
    %145 = vmatprep.subr.mxu0 0.0
    %146 = vmatpush2.msra.mxu0 0.0
    %147 = vmatprep.subr.mxu0 0.0
    %148 = vmatpush2.msra.mxu0 0.0
    %149 = vmatprep.mubr.f32.mxu0 0.0
    %150 = vmatmul.mubr.f32.gmra.mxu0 %v61
    %v151 = vpop.f32.mrf.mxu0
    %v152 = vadd.f32 %v83, %v151
    %v153 = vpop.f32.mrf.mxu0
    %154 = vdwg.mxu0
    %v155 = vld [vmem:[#allocation2] sm:$0xff]
    %v156 = vld [vmem:[#allocation2 + $0x8] sm:$0xff]
    %v157 = vld [vmem:[#allocation2 + $0x10] sm:$0xff]
    %v158 = vld [vmem:[#allocation2 + $0x18] sm:$0xff]
    %v159 = vld [vmem:[#allocation2 + $0x20] sm:$0xff]
    %v160 = vld [vmem:[#allocation2 + $0x28] sm:$0xff]
    %v161 = vld [vmem:[#allocation2 + $0x30] sm:$0xff]
    %v162 = vld [vmem:[#allocation2 + $0x38] sm:$0xff]
    %v163 = vld [vmem:[#allocation2 + $0x40] sm:$0xff]
    %v164 = vld [vmem:[#allocation2 + $0x48] sm:$0xff]
    %v165 = vld [vmem:[#allocation2 + $0x50] sm:$0xff]
    %v166 = vld [vmem:[#allocation2 + $0x58] sm:$0xff]
    %v167 = vld [vmem:[#allocation2 + $0x60] sm:$0xff]
    %v168 = vld [vmem:[#allocation2 + $0x68] sm:$0xff]
    %v169 = vld [vmem:[#allocation2 + $0x70] sm:$0xff]
    %v170 = vld [vmem:[#allocation2 + $0x78] sm:$0xff]
    %v171 = vld [vmem:[%s4] sm:$0x1]
    %v173 = vlaneseq
    %v174 = vshrl.u32 %v173, 7
    %v175 = vsub.s32 0, %v174
    %v176 = vrot.slane %v171, %v175
    %178 = vmatprep.subr.mxu0 0.0
    %179 = vmatpush1.msra.mxu0 %v170
    %180 = vmatprep.subr.mxu0 0.0
    %181 = vmatpush1.msra.mxu0 %v169
    %182 = vmatprep.subr.mxu0 0.0
    %183 = vmatpush1.msra.mxu0 %v168
    %184 = vmatprep.subr.mxu0 0.0
    %185 = vmatpush1.msra.mxu0 %v167
    %186 = vmatprep.subr.mxu0 0.0
    %187 = vmatpush1.msra.mxu0 %v166
    %188 = vmatprep.subr.mxu0 0.0
    %189 = vmatpush1.msra.mxu0 %v165
    %190 = vmatprep.subr.mxu0 0.0
    %191 = vmatpush1.msra.mxu0 %v164
    %192 = vmatprep.subr.mxu0 0.0
    %193 = vmatpush1.msra.mxu0 %v163
    %194 = vmatprep.subr.mxu0 0.0
    %195 = vmatpush1.msra.mxu0 %v162
    %196 = vmatprep.subr.mxu0 0.0
    %197 = vmatpush1.msra.mxu0 %v161
    %198 = vmatprep.subr.mxu0 0.0
    %199 = vmatpush1.msra.mxu0 %v160
    %200 = vmatprep.subr.mxu0 0.0
    %201 = vmatpush1.msra.mxu0 %v159
    %202 = vmatprep.subr.mxu0 0.0
    %203 = vmatpush1.msra.mxu0 %v158
    %204 = vmatprep.subr.mxu0 0.0
    %205 = vmatpush1.msra.mxu0 %v157
    %206 = vmatprep.subr.mxu0 0.0
    %207 = vmatpush1.msra.mxu0 %v156
    %208 = vmatprep.subr.mxu0 0.0
    %209 = vmatpush1.msra.mxu0 %v155
    %210 = vmatprep.subr.mxu0 0.0
    %211 = vmatpush2.msra.mxu0 0.0
    %212 = vmatprep.subr.mxu0 0.0
    %213 = vmatpush2.msra.mxu0 0.0
    %214 = vmatprep.subr.mxu0 0.0
    %215 = vmatpush2.msra.mxu0 0.0
    %216 = vmatprep.subr.mxu0 0.0
    %217 = vmatpush2.msra.mxu0 0.0
    %218 = vmatprep.subr.mxu0 0.0
    %219 = vmatpush2.msra.mxu0 0.0
    %220 = vmatprep.subr.mxu0 0.0
    %221 = vmatpush2.msra.mxu0 0.0
    %222 = vmatprep.subr.mxu0 0.0
    %223 = vmatpush2.msra.mxu0 0.0
    %224 = vmatprep.subr.mxu0 0.0
    %225 = vmatpush2.msra.mxu0 0.0
    %226 = vmatprep.subr.mxu0 0.0
    %227 = vmatpush2.msra.mxu0 0.0
    %228 = vmatprep.subr.mxu0 0.0
    %229 = vmatpush2.msra.mxu0 0.0
    %230 = vmatprep.subr.mxu0 0.0
    %231 = vmatpush2.msra.mxu0 0.0
    %232 = vmatprep.subr.mxu0 0.0
    %233 = vmatpush2.msra.mxu0 0.0
    %234 = vmatprep.subr.mxu0 0.0
    %235 = vmatpush2.msra.mxu0 0.0
    %236 = vmatprep.subr.mxu0 0.0
    %237 = vmatpush2.msra.mxu0 0.0
    %238 = vmatprep.subr.mxu0 0.0
    %239 = vmatpush2.msra.mxu0 0.0
    %240 = vmatprep.subr.mxu0 0.0
    %241 = vmatpush2.msra.mxu0 0.0
    %242 = vmatprep.mubr.f32.mxu0 0.0
    %243 = vmatmul.mubr.f32.gmra.mxu0 %v152
    %v244 = vpop.f32.mrf.mxu0
    %v245 = vadd.f32 %v176, %v244
    %v246 = vpop.f32.mrf.mxu0
    %247 = vdwg.mxu0
    %v248 = vtanh.pop %v245
    %v249 = vld [vmem:[#allocation5] sm:$0xff]
    %v250 = vld [vmem:[#allocation5 + $0x8] sm:$0xff]
    %v251 = vld [vmem:[#allocation5 + $0x10] sm:$0xff]
    %v252 = vld [vmem:[#allocation5 + $0x18] sm:$0xff]
    %v253 = vld [vmem:[#allocation5 + $0x20] sm:$0xff]
    %v254 = vld [vmem:[#allocation5 + $0x28] sm:$0xff]
    %v255 = vld [vmem:[#allocation5 + $0x30] sm:$0xff]
    %v256 = vld [vmem:[#allocation5 + $0x38] sm:$0xff]
    %v257 = vld [vmem:[#allocation5 + $0x40] sm:$0xff]
    %v258 = vld [vmem:[#allocation5 + $0x48] sm:$0xff]
    %v259 = vld [vmem:[#allocation5 + $0x50] sm:$0xff]
    %v260 = vld [vmem:[#allocation5 + $0x58] sm:$0xff]
    %v261 = vld [vmem:[#allocation5 + $0x60] sm:$0xff]
    %v262 = vld [vmem:[#allocation5 + $0x68] sm:$0xff]
    %v263 = vld [vmem:[#allocation5 + $0x70] sm:$0xff]
    %v264 = vld [vmem:[#allocation5 + $0x78] sm:$0xff]
    %v265 = vld [vmem:[%s6] sm:$0x1]
    %v267 = vlaneseq
    %v268 = vshrl.u32 %v267, 7
    %v269 = vsub.s32 0, %v268
    %v270 = vrot.slane %v265, %v269
    %272 = vmatprep.subr.mxu0 0.0
    %273 = vmatpush1.msra.mxu0 %v264
    %274 = vmatprep.subr.mxu0 0.0
    %275 = vmatpush1.msra.mxu0 %v263
    %276 = vmatprep.subr.mxu0 0.0
    %277 = vmatpush1.msra.mxu0 %v262
    %278 = vmatprep.subr.mxu0 0.0
    %279 = vmatpush1.msra.mxu0 %v261
    %280 = vmatprep.subr.mxu0 0.0
    %281 = vmatpush1.msra.mxu0 %v260
    %282 = vmatprep.subr.mxu0 0.0
    %283 = vmatpush1.msra.mxu0 %v259
    %284 = vmatprep.subr.mxu0 0.0
    %285 = vmatpush1.msra.mxu0 %v258
    %286 = vmatprep.subr.mxu0 0.0
    %287 = vmatpush1.msra.mxu0 %v257
    %288 = vmatprep.subr.mxu0 0.0
    %289 = vmatpush1.msra.mxu0 %v256
    %290 = vmatprep.subr.mxu0 0.0
    %291 = vmatpush1.msra.mxu0 %v255
    %292 = vmatprep.subr.mxu0 0.0
    %293 = vmatpush1.msra.mxu0 %v254
    %294 = vmatprep.subr.mxu0 0.0
    %295 = vmatpush1.msra.mxu0 %v253
    %296 = vmatprep.subr.mxu0 0.0
    %297 = vmatpush1.msra.mxu0 %v252
    %298 = vmatprep.subr.mxu0 0.0
    %299 = vmatpush1.msra.mxu0 %v251
    %300 = vmatprep.subr.mxu0 0.0
    %301 = vmatpush1.msra.mxu0 %v250
    %302 = vmatprep.subr.mxu0 0.0
    %303 = vmatpush1.msra.mxu0 %v249
    %304 = vmatprep.subr.mxu0 0.0
    %305 = vmatpush2.msra.mxu0 0.0
    %306 = vmatprep.subr.mxu0 0.0
    %307 = vmatpush2.msra.mxu0 0.0
    %308 = vmatprep.subr.mxu0 0.0
    %309 = vmatpush2.msra.mxu0 0.0
    %310 = vmatprep.subr.mxu0 0.0
    %311 = vmatpush2.msra.mxu0 0.0
    %312 = vmatprep.subr.mxu0 0.0
    %313 = vmatpush2.msra.mxu0 0.0
    %314 = vmatprep.subr.mxu0 0.0
    %315 = vmatpush2.msra.mxu0 0.0
    %316 = vmatprep.subr.mxu0 0.0
    %317 = vmatpush2.msra.mxu0 0.0
    %318 = vmatprep.subr.mxu0 0.0
    %319 = vmatpush2.msra.mxu0 0.0
    %320 = vmatprep.subr.mxu0 0.0
    %321 = vmatpush2.msra.mxu0 0.0
    %322 = vmatprep.subr.mxu0 0.0
    %323 = vmatpush2.msra.mxu0 0.0
    %324 = vmatprep.subr.mxu0 0.0
    %325 = vmatpush2.msra.mxu0 0.0
    %326 = vmatprep.subr.mxu0 0.0
    %327 = vmatpush2.msra.mxu0 0.0
    %328 = vmatprep.subr.mxu0 0.0
    %329 = vmatpush2.msra.mxu0 0.0
    %330 = vmatprep.subr.mxu0 0.0
    %331 = vmatpush2.msra.mxu0 0.0
    %332 = vmatprep.subr.mxu0 0.0
    %333 = vmatpush2.msra.mxu0 0.0
    %334 = vmatprep.subr.mxu0 0.0
    %335 = vmatpush2.msra.mxu0 0.0
    %336 = vmatprep.mubr.f32.mxu0 0.0
    %337 = vmatmul.mubr.f32.gmra.mxu0 %v248
    %v338 = vpop.f32.mrf.mxu0
    %v339 = vadd.f32 %v270, %v338
    %v340 = vpop.f32.mrf.mxu0
    %341 = vdwg.mxu0
    %v342 = vtanh.pop %v339
    %v343 = vld [vmem:[%s7] sm:$0xff]
    %v344 = vld [vmem:[%s7 + $0x8] sm:$0xff]
    %v345 = vld [vmem:[%s7 + $0x10] sm:$0xff]
    %v346 = vld [vmem:[%s7 + $0x18] sm:$0xff]
    %v347 = vld [vmem:[%s7 + $0x20] sm:$0xff]
    %v348 = vld [vmem:[%s7 + $0x28] sm:$0xff]
    %v349 = vld [vmem:[%s7 + $0x30] sm:$0xff]
    %v350 = vld [vmem:[%s7 + $0x38] sm:$0xff]
    %v351 = vld [vmem:[%s7 + $0x40] sm:$0xff]
    %v352 = vld [vmem:[%s7 + $0x48] sm:$0xff]
    %v353 = vld [vmem:[%s7 + $0x50] sm:$0xff]
    %v354 = vld [vmem:[%s7 + $0x58] sm:$0xff]
    %v355 = vld [vmem:[%s7 + $0x60] sm:$0xff]
    %v356 = vld [vmem:[%s7 + $0x68] sm:$0xff]
    %v357 = vld [vmem:[%s7 + $0x70] sm:$0xff]
    %v358 = vld [vmem:[%s7 + $0x78] sm:$0xff]
    %v359 = vld [vmem:[%s8] sm:$0x1]
    %v361 = vlaneseq
    %v362 = vshrl.u32 %v361, 7
    %v363 = vsub.s32 0, %v362
    %v364 = vrot.slane %v359, %v363
    %366 = vmatprep.subr.mxu0 0.0
    %367 = vmatpush1.msra.mxu0 %v358
    %368 = vmatprep.subr.mxu0 0.0
    %369 = vmatpush1.msra.mxu0 %v357
    %370 = vmatprep.subr.mxu0 0.0
    %371 = vmatpush1.msra.mxu0 %v356
    %372 = vmatprep.subr.mxu0 0.0
    %373 = vmatpush1.msra.mxu0 %v355
    %374 = vmatprep.subr.mxu0 0.0
    %375 = vmatpush1.msra.mxu0 %v354
    %376 = vmatprep.subr.mxu0 0.0
    %377 = vmatpush1.msra.mxu0 %v353
    %378 = vmatprep.subr.mxu0 0.0
    %379 = vmatpush1.msra.mxu0 %v352
    %380 = vmatprep.subr.mxu0 0.0
    %381 = vmatpush1.msra.mxu0 %v351
    %382 = vmatprep.subr.mxu0 0.0
    %383 = vmatpush1.msra.mxu0 %v350
    %384 = vmatprep.subr.mxu0 0.0
    %385 = vmatpush1.msra.mxu0 %v349
    %386 = vmatprep.subr.mxu0 0.0
    %387 = vmatpush1.msra.mxu0 %v348
    %388 = vmatprep.subr.mxu0 0.0
    %389 = vmatpush1.msra.mxu0 %v347
    %390 = vmatprep.subr.mxu0 0.0
    %391 = vmatpush1.msra.mxu0 %v346
    %392 = vmatprep.subr.mxu0 0.0
    %393 = vmatpush1.msra.mxu0 %v345
    %394 = vmatprep.subr.mxu0 0.0
    %395 = vmatpush1.msra.mxu0 %v344
    %396 = vmatprep.subr.mxu0 0.0
    %397 = vmatpush1.msra.mxu0 %v343
    %398 = vmatprep.subr.mxu0 0.0
    %399 = vmatpush2.msra.mxu0 0.0
    %400 = vmatprep.subr.mxu0 0.0
    %401 = vmatpush2.msra.mxu0 0.0
    %402 = vmatprep.subr.mxu0 0.0
    %403 = vmatpush2.msra.mxu0 0.0
    %404 = vmatprep.subr.mxu0 0.0
    %405 = vmatpush2.msra.mxu0 0.0
    %406 = vmatprep.subr.mxu0 0.0
    %407 = vmatpush2.msra.mxu0 0.0
    %408 = vmatprep.subr.mxu0 0.0
    %409 = vmatpush2.msra.mxu0 0.0
    %410 = vmatprep.subr.mxu0 0.0
    %411 = vmatpush2.msra.mxu0 0.0
    %412 = vmatprep.subr.mxu0 0.0
    %413 = vmatpush2.msra.mxu0 0.0
    %414 = vmatprep.subr.mxu0 0.0
    %415 = vmatpush2.msra.mxu0 0.0
    %416 = vmatprep.subr.mxu0 0.0
    %417 = vmatpush2.msra.mxu0 0.0
    %418 = vmatprep.subr.mxu0 0.0
    %419 = vmatpush2.msra.mxu0 0.0
    %420 = vmatprep.subr.mxu0 0.0
    %421 = vmatpush2.msra.mxu0 0.0
    %422 = vmatprep.subr.mxu0 0.0
    %423 = vmatpush2.msra.mxu0 0.0
    %424 = vmatprep.subr.mxu0 0.0
    %425 = vmatpush2.msra.mxu0 0.0
    %426 = vmatprep.subr.mxu0 0.0
    %427 = vmatpush2.msra.mxu0 0.0
    %428 = vmatprep.subr.mxu0 0.0
    %429 = vmatpush2.msra.mxu0 0.0
    %430 = vmatprep.mubr.f32.mxu0 0.0
    %431 = vmatmul.mubr.f32.gmra.mxu0 %v342
    %v432 = vpop.f32.mrf.mxu0
    %v433 = vadd.f32 %v364, %v432
    %v434 = vpop.f32.mrf.mxu0
    %435 = vdwg.mxu0
    %vm436 = vcmask 64512
    %437 = vst.msk [vmem:[#allocation7] sm:$0xff] %vm436, %v433
    // Predicated region
    $region46: #{tpu_custom_call.1} parent=1 // pred_check
      _
    $region47: #{tpu_custom_call.1} parent=1 // pred_check_branch
      %439 = sbr.rel (0) target = $region49
    $region48: #{tpu_custom_call.1} parent=1 // pred_region
      %s441 = ssub.s32 128, 128
      %442 = vsyncadd [#allocation4], %s441
      %s444 = sshll.u32 [#allocation7], 4
      %s445 = int_to_ptr.vmem [resolvable:$true] %s444
      %447 = dma.vmem_to_hbm [thread:$0]  %s445, 128, %s9, [#allocation4]
    $region49: #{tpu_custom_call.1} parent=1 // pred_fallthru
      _
    // Predicated region
    $region50: #{tpu_custom_call.1} parent=1 // pred_check
      _
    $region51: #{tpu_custom_call.1} parent=1 // pred_check_branch
      %449 = sbr.rel (0) target = $region53
    $region52: #{tpu_custom_call.1} parent=1 // pred_region
      %450 = dma.done [#allocation4], 128
    $region53: #{tpu_custom_call.1} parent=1 // pred_fallthru
      _
    %451 = vsyncpa [#allocation3], 1
    %452 = vsyncpa [#allocation6], 1
    %453 = vsyncpa [#allocation4], 1

</llo_original>
